<compile_context>
chip_gen: v6e
topology: v6e:2x2x1
jax: 0.10.0
libtpu: 0.0.40
codegen_flags: <defaults>
</compile_context>

<pallas_src>
import functools

import jax
import jax.numpy as jnp
from jax.experimental import pallas as pl
from jax.experimental.pallas import tpu as pltpu

EPS = 1e-10  # matches sample_gumbel / gumbel_softmax eps


def _round_up(a, b):
    return ((a + b - 1) // b) * b


def _block_diag(a, b):
    ra, ca = a.shape
    rb, cb = b.shape
    out = jnp.zeros((ra + rb, ca + cb), a.dtype)
    out = out.at[:ra, :ca].set(a)
    out = out.at[ra:, ca:].set(b)
    return out


def _mlp_dict_softmax_kernel(x_ref, u_ref,
                             wi1, bi1, wi2, bi2,
                             wc1, bc1, wb2, bb2, wb3, bb3,
                             fused_ref, *, tau, edge_types):
    bf16 = jnp.bfloat16
    f32 = jnp.float32

    # --- init_MLP layers 1-2 (ReLU after each) ---
    h = jnp.dot(x_ref[...].astype(bf16), wi1[...], preferred_element_type=f32) + bi1[...]
    h = jnp.maximum(h, 0.0)
    h = jnp.dot(h.astype(bf16), wi2[...], preferred_element_type=f32) + bi2[...]
    h = jnp.maximum(h, 0.0)

    # --- composed (init_MLP layer 3  ∘  fused branch layer 1): H2 -> 2*H1, then ReLU ---
    g = jnp.dot(h.astype(bf16), wc1[...], preferred_element_type=f32) + bc1[...]
    g = jnp.maximum(g, 0.0)

    # --- block-diagonal [MLP_distribution | MLP_factor] layers 2-3 ---
    g = jnp.dot(g.astype(bf16), wb2[...], preferred_element_type=f32) + bb2[...]
    g = jnp.maximum(g, 0.0)
    g = jnp.dot(g.astype(bf16), wb3[...], preferred_element_type=f32) + bb3[...]

    E = edge_types
    logits = g[:, :E]          # MLP_distribution(init_MLP(x))
    fac = g[:, E:E + 1]        # MLP_factor(init_MLP(x)) pre-activation

    # gumbel noise: -log(eps - log(U + eps))   (exact sample_gumbel formula)
    noise = -jnp.log(EPS - jnp.log(u_ref[...] + EPS))

    # gumbel_softmax(tau=1/2, hard=False): softmax over the edge_type axis.
    # Exact divide keeps every row on the simplex (|sum-1| ~ f32 eps).
    y = (logits + noise) * (1.0 / tau)
    y = y - jnp.max(y, axis=-1, keepdims=True)
    p = jnp.exp(y)
    dist = p / jnp.sum(p, axis=-1, keepdims=True)

    # factor = sigmoid(fac), numerically stable (no exp overflow for fac << 0)
    pos = fac >= 0.0
    z = jnp.exp(jnp.where(pos, -fac, fac))
    factor = jnp.where(pos, 1.0, z) / (1.0 + z)

    # single lane-merged store: [ factor*dist | dist ] -> (tm, 2E)
    fused_ref[...] = jnp.concatenate([factor * dist, dist], axis=-1)


def _pack_params(params):
    """18 f32 arrays (init_MLP, MLP_distribution, MLP_factor) -> 10 kernel operands."""
    (wi1, bi1, wi2, bi2, wi3, bi3,
     wd1, bd1, wd2, bd2, wd3, bd3,
     wf1, bf1, wf2, bf2, wf3, bf3) = params
    bf16 = jnp.bfloat16

    # Fuse distribution + factor MLPs (shared input -> concat layer 1, block-diag 2/3).
    wb1 = jnp.concatenate([wd1, wf1], axis=1)          # (D, 2*H1)
    bb1 = jnp.concatenate([bd1, bf1], axis=1)          # (1, 2*H1)

    # Compose init_MLP layer 3 (no activation after it) with the branch layer 1 in f32.
    wc1 = wi3 @ wb1                                    # (H2, 2*H1)   exact compose
    bc1 = bi3 @ wb1 + bb1                              # (1, 2*H1)

    wb2 = _block_diag(wd2, wf2)                        # (2*H1, 2*H2)
    bb2 = jnp.concatenate([bd2, bf2], axis=1)          # (1, 2*H2)
    wb3 = _block_diag(wd3, wf3)                        # (2*H2, E+1)
    bb3 = jnp.concatenate([bd3, bf3], axis=1)          # (1, E+1)

    # Weights bf16 (halves weight DMA, no per-step casts); biases stay f32.
    return [wi1.astype(bf16), bi1, wi2.astype(bf16), bi2,
            wc1.astype(bf16), bc1, wb2.astype(bf16), bb2, wb3.astype(bf16), bb3]


def mlp_dict_softmax(x2d, u, params, *, tau=0.5, tm=1024):
    """x2d: (M, D) f32, u: (M, E) uniform[0,1), params: 18 f32 arrays
    (init_MLP w1,b1,w2,b2,w3,b3 ; MLP_distribution ... ; MLP_factor ...)."""
    M, D = x2d.shape
    E = u.shape[1]
    assert u.shape[0] == M

    packed = _pack_params(params)

    # --- chip-aware tile size --------------------------------------------------
    try:
        info = pltpu.get_tpu_info()
        vmem_cap = int(getattr(info, "vmem_capacity_bytes", 64 * 1024 * 1024))
    except Exception:
        vmem_cap = 64 * 1024 * 1024          # conservative (v7x per-core VMEM)

    # Per-row VMEM: x/u/out blocks lane-pad to 128 lanes and are double-buffered,
    # plus ~16 lane-padded f32 rows of intermediates (generous).
    per_row_bytes = (3 * 2 + 16) * 128 * 4
    weight_bytes = sum(int(p.size) * p.dtype.itemsize for p in packed)
    budget = max(vmem_cap // 4, 8 * 1024 * 1024)
    tm_cap = max(256, (budget - 2 * weight_bytes) // per_row_bytes)
    tm_cap = max(8, (tm_cap // 8) * 8)

    m8 = _round_up(M, 8)
    tm_eff = min(tm, tm_cap, m8)
    tm_eff = max(8, (tm_eff // 8) * 8)
    # Megacore: only force >= 2 grid steps when each half still gets >= 512 rows
    # (small batches no longer get shredded into tiny tiles).
    if m8 // tm_eff < 2 and m8 >= 1024:
        tm_eff = _round_up(pl.cdiv(m8, 2), 8)

    Mp = _round_up(M, tm_eff)
    if Mp != M:
        x2d = jnp.pad(x2d, ((0, Mp - M), (0, 0)))
        u = jnp.pad(u, ((0, Mp - M), (0, 0)))

    # Explicit scoped-VMEM limit sized from the tile (v5e default is only 16 MiB).
    est = tm_eff * per_row_bytes + 2 * weight_bytes + (4 << 20)
    vmem_limit = int(min(max(est, 32 * 1024 * 1024), vmem_cap))

    const2d = lambda i: (0, 0)  # weights/biases resident (constant index_map)
    in_specs = [
        pl.BlockSpec((tm_eff, D), lambda i: (i, 0)),   # x row tile
        pl.BlockSpec((tm_eff, E), lambda i: (i, 0)),   # uniform noise row tile
    ] + [pl.BlockSpec(p.shape, const2d) for p in packed]

    out_spec = pl.BlockSpec((tm_eff, 2 * E), lambda i: (i, 0))
    out_shape = jax.ShapeDtypeStruct((Mp, 2 * E), jnp.float32)

    fused = pl.pallas_call(
        functools.partial(_mlp_dict_softmax_kernel, tau=tau, edge_types=E),
        out_shape=out_shape,
        grid=(Mp // tm_eff,),
        in_specs=in_specs,
        out_specs=out_spec,
        compiler_params=pltpu.CompilerParams(
            dimension_semantics=("parallel",),
            vmem_limit_bytes=vmem_limit),
    )(x2d, u, *packed)

    fused = fused[:M]
    return fused[:, :E], fused[:, E:]   # (out = factor*dist, distribution)


def _reference(x2d, u, params, tau=0.5):
    """Plain-JAX f32 reference mirroring the PyTorch forward (no bf16, no fusion)."""
    def mlp(x, w1, b1, w2, b2, w3, b3):
        h = jnp.maximum(x @ w1 + b1, 0.0)
        h = jnp.maximum(h @ w2 + b2, 0.0)
        return h @ w3 + b3

    h = mlp(x2d, *params[0:6])           # init_MLP
    logits = mlp(h, *params[6:12])       # MLP_distribution
    fac = mlp(h, *params[12:18])         # MLP_factor
    g = -jnp.log(EPS - jnp.log(u + EPS))
    dist = jax.nn.softmax((logits + g) / tau, axis=-1)
    factor = jax.nn.sigmoid(fac)
    return factor * dist, dist


def _linear_params(key, fan_in, fan_out):
    """Deterministic PyTorch-like uniform(-1/sqrt(fan_in), 1/sqrt(fan_in)) init."""
    kw, kb = jax.random.split(key)
    bound = 1.0 / jnp.sqrt(jnp.float32(fan_in))
    w = jax.random.uniform(kw, (fan_in, fan_out), jnp.float32, -bound, bound)
    b = jax.random.uniform(kb, (1, fan_out), jnp.float32, -bound, bound)
    return w, b


if __name__ == "__main__":
    # Small shapes consistent with the module (hidden_size scaled down).
    B, N, D = 2, 8, 32            # batch, agents, input_dim
    H1, H2 = 128, 64              # hidden_size
    E = 5                         # edge_types (bottleneck_dim)
    TAU = 0.5                     # tau = 1/2 in the forward

    key = jax.random.PRNGKey(0)
    k_x, k_u, *k_layers = jax.random.split(key, 2 + 9)

    # init_MLP: D->H1->H2->D ; MLP_distribution: D->H1->H2->E ; MLP_factor: D->H1->H2->1
    dims = [(D, H1), (H1, H2), (H2, D),
            (D, H1), (H1, H2), (H2, E),
            (D, H1), (H1, H2), (H2, 1)]
    params = []
    for kk, (fi, fo) in zip(k_layers, dims):
        w, b = _linear_params(kk, fi, fo)
        params.extend([w, b])
    params = tuple(params)

    x = jax.random.normal(k_x, (B, N, D), jnp.float32)
    x2d = x.reshape(B * N, D)
    # U ~ Uniform[0,1) (the torch.rand draw in sample_gumbel), sampled in the wrapper.
    u = jax.random.uniform(k_u, (B * N, E), jnp.float32)

    out, dist = mlp_dict_softmax(x2d, u, params, tau=TAU)
    out = jax.block_until_ready(out)
    dist = jax.block_until_ready(dist)

    ref_out, ref_dist = _reference(x2d, u, params, tau=TAU)

    # bf16 MXU matmuls vs the f32 reference -> modest tolerances.
    assert jnp.allclose(out, ref_out, rtol=5e-2, atol=5e-3), "out mismatch"
    assert jnp.allclose(dist, ref_dist, rtol=5e-2, atol=5e-3), "dist mismatch"
    # exact divide in the kernel -> rows sum to 1 up to f32 rounding
    assert jnp.allclose(jnp.sum(dist, axis=-1), 1.0, atol=1e-3)
    assert bool(jnp.all(jnp.isfinite(out))) and bool(jnp.all(jnp.isfinite(dist)))

    print("KERNEL_OK")
</pallas_src>

<mosaic_0001>
module attributes {stable_mosaic.version = 11 : i64} {
  func.func @_mlp_dict_softmax_kernel(%arg0: i32, %arg1: memref<16x32xf32, #tpu.memory_space<vmem>>, %arg2: memref<16x5xf32, #tpu.memory_space<vmem>>, %arg3: memref<32x128xbf16, #tpu.memory_space<vmem>>, %arg4: memref<1x128xf32, #tpu.memory_space<vmem>>, %arg5: memref<128x64xbf16, #tpu.memory_space<vmem>>, %arg6: memref<1x64xf32, #tpu.memory_space<vmem>>, %arg7: memref<64x256xbf16, #tpu.memory_space<vmem>>, %arg8: memref<1x256xf32, #tpu.memory_space<vmem>>, %arg9: memref<256x128xbf16, #tpu.memory_space<vmem>>, %arg10: memref<1x128xf32, #tpu.memory_space<vmem>>, %arg11: memref<128x6xbf16, #tpu.memory_space<vmem>>, %arg12: memref<1x6xf32, #tpu.memory_space<vmem>>, %arg13: memref<16x10xf32, #tpu.memory_space<vmem>>) attributes {dimension_semantics = [#tpu.dimension_semantics<parallel>], iteration_bounds = array<i64: 1>, scalar_prefetch = 0 : i64, scratch_operands = 0 : i64, tpu.core_type = #tpu.core_type<tc>, window_params = [{transform_indices = @transform_0, window_bounds = array<i64: 16, 32>}, {transform_indices = @transform_1, window_bounds = array<i64: 16, 5>}, {pipeline_mode = #tpu.pipeline_mode<synchronous>, transform_indices = @transform_2, window_bounds = array<i64: 32, 128>}, {pipeline_mode = #tpu.pipeline_mode<synchronous>, transform_indices = @transform_3, window_bounds = array<i64: 1, 128>}, {pipeline_mode = #tpu.pipeline_mode<synchronous>, transform_indices = @transform_4, window_bounds = array<i64: 128, 64>}, {pipeline_mode = #tpu.pipeline_mode<synchronous>, transform_indices = @transform_5, window_bounds = array<i64: 1, 64>}, {pipeline_mode = #tpu.pipeline_mode<synchronous>, transform_indices = @transform_6, window_bounds = array<i64: 64, 256>}, {pipeline_mode = #tpu.pipeline_mode<synchronous>, transform_indices = @transform_7, window_bounds = array<i64: 1, 256>}, {pipeline_mode = #tpu.pipeline_mode<synchronous>, transform_indices = @transform_8, window_bounds = array<i64: 256, 128>}, {pipeline_mode = #tpu.pipeline_mode<synchronous>, transform_indices = @transform_9, window_bounds = array<i64: 1, 128>}, {pipeline_mode = #tpu.pipeline_mode<synchronous>, transform_indices = @transform_10, window_bounds = array<i64: 128, 6>}, {pipeline_mode = #tpu.pipeline_mode<synchronous>, transform_indices = @transform_11, window_bounds = array<i64: 1, 6>}, {transform_indices = @transform_12, window_bounds = array<i64: 16, 10>}]} {
    %c0 = arith.constant 0 : index
    %c0_0 = arith.constant 0 : index
    %0 = vector.load %arg1[%c0, %c0_0] : memref<16x32xf32, #tpu.memory_space<vmem>>, vector<16x32xf32>
    %1 = arith.truncf %0 : vector<16x32xf32> to vector<16x32xbf16>
    %c0_1 = arith.constant 0 : index
    %c0_2 = arith.constant 0 : index
    %2 = vector.load %arg3[%c0_1, %c0_2] : memref<32x128xbf16, #tpu.memory_space<vmem>>, vector<32x128xbf16>
    %cst = arith.constant dense<0.000000e+00> : vector<16x128xf32>
    %3 = tpu.matmul %1, %2, %cst {dimension_numbers = #tpu.dot_dimension_numbers<[1], [0], [0], [1], [0, 0, 1, 1], [], []>} : vector<16x32xbf16>, vector<32x128xbf16>, vector<16x128xf32> -> vector<16x128xf32>
    %c0_3 = arith.constant 0 : index
    %c0_4 = arith.constant 0 : index
    %4 = vector.load %arg4[%c0_3, %c0_4] : memref<1x128xf32, #tpu.memory_space<vmem>>, vector<1x128xf32>
    %5 = vector.broadcast %4 : vector<1x128xf32> to vector<16x128xf32>
    %6 = arith.addf %3, %5 : vector<16x128xf32>
    %cst_5 = arith.constant 0.000000e+00 : f32
    %7 = vector.broadcast %cst_5 : f32 to vector<16x128xf32>
    %8 = arith.maximumf %6, %7 : vector<16x128xf32>
    %9 = arith.truncf %8 : vector<16x128xf32> to vector<16x128xbf16>
    %c0_6 = arith.constant 0 : index
    %c0_7 = arith.constant 0 : index
    %10 = vector.load %arg5[%c0_6, %c0_7] : memref<128x64xbf16, #tpu.memory_space<vmem>>, vector<128x64xbf16>
    %cst_8 = arith.constant dense<0.000000e+00> : vector<16x64xf32>
    %11 = tpu.matmul %9, %10, %cst_8 {dimension_numbers = #tpu.dot_dimension_numbers<[1], [0], [0], [1], [0, 0, 1, 1], [], []>} : vector<16x128xbf16>, vector<128x64xbf16>, vector<16x64xf32> -> vector<16x64xf32>
    %c0_9 = arith.constant 0 : index
    %c0_10 = arith.constant 0 : index
    %12 = vector.load %arg6[%c0_9, %c0_10] : memref<1x64xf32, #tpu.memory_space<vmem>>, vector<1x64xf32>
    %13 = vector.broadcast %12 : vector<1x64xf32> to vector<16x64xf32>
    %14 = arith.addf %11, %13 : vector<16x64xf32>
    %cst_11 = arith.constant 0.000000e+00 : f32
    %15 = vector.broadcast %cst_11 : f32 to vector<16x64xf32>
    %16 = arith.maximumf %14, %15 : vector<16x64xf32>
    %17 = arith.truncf %16 : vector<16x64xf32> to vector<16x64xbf16>
    %c0_12 = arith.constant 0 : index
    %c0_13 = arith.constant 0 : index
    %18 = vector.load %arg7[%c0_12, %c0_13] : memref<64x256xbf16, #tpu.memory_space<vmem>>, vector<64x256xbf16>
    %cst_14 = arith.constant dense<0.000000e+00> : vector<16x256xf32>
    %19 = tpu.matmul %17, %18, %cst_14 {dimension_numbers = #tpu.dot_dimension_numbers<[1], [0], [0], [1], [0, 0, 1, 1], [], []>} : vector<16x64xbf16>, vector<64x256xbf16>, vector<16x256xf32> -> vector<16x256xf32>
    %c0_15 = arith.constant 0 : index
    %c0_16 = arith.constant 0 : index
    %20 = vector.load %arg8[%c0_15, %c0_16] : memref<1x256xf32, #tpu.memory_space<vmem>>, vector<1x256xf32>
    %21 = vector.broadcast %20 : vector<1x256xf32> to vector<16x256xf32>
    %22 = arith.addf %19, %21 : vector<16x256xf32>
    %cst_17 = arith.constant 0.000000e+00 : f32
    %23 = vector.broadcast %cst_17 : f32 to vector<16x256xf32>
    %24 = arith.maximumf %22, %23 : vector<16x256xf32>
    %25 = arith.truncf %24 : vector<16x256xf32> to vector<16x256xbf16>
    %c0_18 = arith.constant 0 : index
    %c0_19 = arith.constant 0 : index
    %26 = vector.load %arg9[%c0_18, %c0_19] : memref<256x128xbf16, #tpu.memory_space<vmem>>, vector<256x128xbf16>
    %cst_20 = arith.constant dense<0.000000e+00> : vector<16x128xf32>
    %27 = tpu.matmul %25, %26, %cst_20 {dimension_numbers = #tpu.dot_dimension_numbers<[1], [0], [0], [1], [0, 0, 1, 1], [], []>} : vector<16x256xbf16>, vector<256x128xbf16>, vector<16x128xf32> -> vector<16x128xf32>
    %c0_21 = arith.constant 0 : index
    %c0_22 = arith.constant 0 : index
    %28 = vector.load %arg10[%c0_21, %c0_22] : memref<1x128xf32, #tpu.memory_space<vmem>>, vector<1x128xf32>
    %29 = vector.broadcast %28 : vector<1x128xf32> to vector<16x128xf32>
    %30 = arith.addf %27, %29 : vector<16x128xf32>
    %cst_23 = arith.constant 0.000000e+00 : f32
    %31 = vector.broadcast %cst_23 : f32 to vector<16x128xf32>
    %32 = arith.maximumf %30, %31 : vector<16x128xf32>
    %33 = arith.truncf %32 : vector<16x128xf32> to vector<16x128xbf16>
    %c0_24 = arith.constant 0 : index
    %c0_25 = arith.constant 0 : index
    %34 = vector.load %arg11[%c0_24, %c0_25] : memref<128x6xbf16, #tpu.memory_space<vmem>>, vector<128x6xbf16>
    %cst_26 = arith.constant dense<0.000000e+00> : vector<16x6xf32>
    %35 = tpu.matmul %33, %34, %cst_26 {dimension_numbers = #tpu.dot_dimension_numbers<[1], [0], [0], [1], [0, 0, 1, 1], [], []>} : vector<16x128xbf16>, vector<128x6xbf16>, vector<16x6xf32> -> vector<16x6xf32>
    %c0_27 = arith.constant 0 : index
    %c0_28 = arith.constant 0 : index
    %36 = vector.load %arg12[%c0_27, %c0_28] : memref<1x6xf32, #tpu.memory_space<vmem>>, vector<1x6xf32>
    %37 = vector.broadcast %36 : vector<1x6xf32> to vector<16x6xf32>
    %38 = arith.addf %35, %37 : vector<16x6xf32>
    %39 = vector.extract_strided_slice %38 {offsets = [0, 0], sizes = [16, 5], strides = [1, 1]} : vector<16x6xf32> to vector<16x5xf32>
    %40 = vector.extract_strided_slice %38 {offsets = [0, 5], sizes = [16, 1], strides = [1, 1]} : vector<16x6xf32> to vector<16x1xf32>
    %c0_29 = arith.constant 0 : index
    %c0_30 = arith.constant 0 : index
    %41 = vector.load %arg2[%c0_29, %c0_30] : memref<16x5xf32, #tpu.memory_space<vmem>>, vector<16x5xf32>
    %cst_31 = arith.constant 1.000000e-10 : f32
    %42 = vector.broadcast %cst_31 : f32 to vector<16x5xf32>
    %43 = arith.addf %41, %42 : vector<16x5xf32>
    %44 = math.log %43 : vector<16x5xf32>
    %cst_32 = arith.constant 1.000000e-10 : f32
    %45 = vector.broadcast %cst_32 : f32 to vector<16x5xf32>
    %46 = arith.subf %45, %44 : vector<16x5xf32>
    %47 = math.log %46 : vector<16x5xf32>
    %cst_33 = arith.constant 0.000000e+00 : f32
    %48 = vector.broadcast %cst_33 : f32 to vector<16x5xf32>
    %49 = arith.subf %48, %47 : vector<16x5xf32>
    %50 = arith.addf %39, %49 : vector<16x5xf32>
    %cst_34 = arith.constant 2.000000e+00 : f32
    %51 = vector.broadcast %cst_34 : f32 to vector<16x5xf32>
    %52 = arith.mulf %50, %51 : vector<16x5xf32>
    %cst_35 = arith.constant dense<0xFF800000> : vector<16xf32>
    %53 = vector.multi_reduction <maximumf>, %52, %cst_35 [1] : vector<16x5xf32> to vector<16xf32>
    %54 = vector.shape_cast %53 : vector<16xf32> to vector<16x1xf32>
    %55 = vector.broadcast %54 : vector<16x1xf32> to vector<16x5xf32>
    %56 = arith.subf %52, %55 : vector<16x5xf32>
    %57 = math.exp %56 : vector<16x5xf32>
    %cst_36 = arith.constant dense<0.000000e+00> : vector<16xf32>
    %58 = vector.multi_reduction <add>, %57, %cst_36 [1] : vector<16x5xf32> to vector<16xf32>
    %59 = vector.shape_cast %58 : vector<16xf32> to vector<16x1xf32>
    %60 = vector.broadcast %59 : vector<16x1xf32> to vector<16x5xf32>
    %61 = arith.divf %57, %60 : vector<16x5xf32>
    %cst_37 = arith.constant 0.000000e+00 : f32
    %62 = vector.broadcast %cst_37 : f32 to vector<16x1xf32>
    %63 = arith.cmpf oge, %40, %62 : vector<16x1xf32>
    %cst_38 = arith.constant 0.000000e+00 : f32
    %64 = vector.broadcast %cst_38 : f32 to vector<16x1xf32>
    %65 = arith.subf %64, %40 : vector<16x1xf32>
    %66 = arith.select %63, %65, %40 : vector<16x1xi1>, vector<16x1xf32>
    %67 = math.exp %66 : vector<16x1xf32>
    %cst_39 = arith.constant 1.000000e+00 : f32
    %68 = vector.broadcast %cst_39 : f32 to vector<16x1xf32>
    %69 = arith.select %63, %68, %67 : vector<16x1xi1>, vector<16x1xf32>
    %cst_40 = arith.constant 1.000000e+00 : f32
    %70 = vector.broadcast %cst_40 : f32 to vector<16x1xf32>
    %71 = arith.addf %70, %67 : vector<16x1xf32>
    %72 = arith.divf %69, %71 : vector<16x1xf32>
    %73 = vector.broadcast %72 : vector<16x1xf32> to vector<16x5xf32>
    %74 = arith.mulf %73, %61 : vector<16x5xf32>
    %75 = tpu.concatenate %74, %61 in 1 : vector<16x5xf32>, vector<16x5xf32> -> vector<16x10xf32>
    %c0_41 = arith.constant 0 : index
    %c0_42 = arith.constant 0 : index
    %76 = vector.load %arg13[%c0_41, %c0_42] : memref<16x10xf32, #tpu.memory_space<vmem>>, vector<16x10xf32>
    tpu.vector_store %arg13[%c0_41, %c0_42], %75 {strides = array<i32>} : memref<16x10xf32, #tpu.memory_space<vmem>>, vector<16x10xf32>,
    return
  }
  func.func @transform_0(%arg0: i32) -> (i32, i32) {
    %c0_i32 = arith.constant 0 : i32
    %c0_i32_0 = arith.constant 0 : i32
    return %arg0, %c0_i32 : i32, i32
  }
  func.func @transform_1(%arg0: i32) -> (i32, i32) {
    %c0_i32 = arith.constant 0 : i32
    %c0_i32_0 = arith.constant 0 : i32
    return %arg0, %c0_i32 : i32, i32
  }
  func.func @transform_2(%arg0: i32) -> (i32, i32) {
    %c0_i32 = arith.constant 0 : i32
    %c0_i32_0 = arith.constant 0 : i32
    %c0_i32_1 = arith.constant 0 : i32
    return %c0_i32, %c0_i32_0 : i32, i32
  }
  func.func @transform_3(%arg0: i32) -> (i32, i32) {
    %c0_i32 = arith.constant 0 : i32
    %c0_i32_0 = arith.constant 0 : i32
    %c0_i32_1 = arith.constant 0 : i32
    return %c0_i32, %c0_i32_0 : i32, i32
  }
  func.func @transform_4(%arg0: i32) -> (i32, i32) {
    %c0_i32 = arith.constant 0 : i32
    %c0_i32_0 = arith.constant 0 : i32
    %c0_i32_1 = arith.constant 0 : i32
    return %c0_i32, %c0_i32_0 : i32, i32
  }
  func.func @transform_5(%arg0: i32) -> (i32, i32) {
    %c0_i32 = arith.constant 0 : i32
    %c0_i32_0 = arith.constant 0 : i32
    %c0_i32_1 = arith.constant 0 : i32
    return %c0_i32, %c0_i32_0 : i32, i32
  }
  func.func @transform_6(%arg0: i32) -> (i32, i32) {
    %c0_i32 = arith.constant 0 : i32
    %c0_i32_0 = arith.constant 0 : i32
    %c0_i32_1 = arith.constant 0 : i32
    return %c0_i32, %c0_i32_0 : i32, i32
  }
  func.func @transform_7(%arg0: i32) -> (i32, i32) {
    %c0_i32 = arith.constant 0 : i32
    %c0_i32_0 = arith.constant 0 : i32
    %c0_i32_1 = arith.constant 0 : i32
    return %c0_i32, %c0_i32_0 : i32, i32
  }
  func.func @transform_8(%arg0: i32) -> (i32, i32) {
    %c0_i32 = arith.constant 0 : i32
    %c0_i32_0 = arith.constant 0 : i32
    %c0_i32_1 = arith.constant 0 : i32
    return %c0_i32, %c0_i32_0 : i32, i32
  }
  func.func @transform_9(%arg0: i32) -> (i32, i32) {
    %c0_i32 = arith.constant 0 : i32
    %c0_i32_0 = arith.constant 0 : i32
    %c0_i32_1 = arith.constant 0 : i32
    return %c0_i32, %c0_i32_0 : i32, i32
  }
  func.func @transform_10(%arg0: i32) -> (i32, i32) {
    %c0_i32 = arith.constant 0 : i32
    %c0_i32_0 = arith.constant 0 : i32
    %c0_i32_1 = arith.constant 0 : i32
    return %c0_i32, %c0_i32_0 : i32, i32
  }
  func.func @transform_11(%arg0: i32) -> (i32, i32) {
    %c0_i32 = arith.constant 0 : i32
    %c0_i32_0 = arith.constant 0 : i32
    %c0_i32_1 = arith.constant 0 : i32
    return %c0_i32, %c0_i32_0 : i32, i32
  }
  func.func @transform_12(%arg0: i32) -> (i32, i32) {
    %c0_i32 = arith.constant 0 : i32
    %c0_i32_0 = arith.constant 0 : i32
    return %arg0, %c0_i32 : i32, i32
  }
}

</mosaic_0001>

<llo_original>
// kernel: tpu_custom_call.1
$region0: #{tpu_custom_call.1}
  #allocation0 [shape = 'u32[]', space=smem, size = 0x4, offset = 0x4, fixed_abs, tag = 'smem constant byte address 0x4 - core index']
  #allocation1 [shape = 'u32[144,128]{1,0:T(1,128)}', space=vmem, size = 0x12000, scoped, tag = 'internal scratch']
  %s0 = inlined_call_operand.hbm [shape: f32[16,32], index: 0, kind: input, shape index: {}]
  %s1 = inlined_call_operand.vmem [shape: f32[16,5], index: 1, kind: input, shape index: {}]
  %s2 = inlined_call_operand.hbm [shape: bf16[32,128], index: 2, kind: input, shape index: {}]
  %s3 = inlined_call_operand.vmem [shape: f32[1,128], index: 3, kind: input, shape index: {}]
  %s4 = inlined_call_operand.vmem [shape: bf16[128,64], index: 4, kind: input, shape index: {}]
  %s5 = inlined_call_operand.vmem [shape: f32[1,64], index: 5, kind: input, shape index: {}]
  %s6 = inlined_call_operand.vmem [shape: bf16[64,256], index: 6, kind: input, shape index: {}]
  %s7 = inlined_call_operand.vmem [shape: f32[1,256], index: 7, kind: input, shape index: {}]
  %s8 = inlined_call_operand.vmem [shape: bf16[256,128], index: 8, kind: input, shape index: {}]
  %s9 = inlined_call_operand.vmem [shape: f32[1,128], index: 9, kind: input, shape index: {}]
  %s10 = inlined_call_operand.vmem [shape: bf16[128,6], index: 10, kind: input, shape index: {}]
  %s11 = inlined_call_operand.vmem [shape: f32[1,6], index: 11, kind: input, shape index: {}]
  %s12 = inlined_call_operand.hbm [shape: f32[16,10], index: 12, kind: output, shape index: {}]
  %s13 = sld [smem:[#allocation0]]
  $region66: #{tpu_custom_call.1} parent=0
    _
  %s15 = ssub.s32 1, %s13
  %s16 = scalar_select 0, %s15, %s13
  $region1: #{tpu_custom_call.1} parent=0
    #allocation2 [shape = 'u8[8192]{0}', space=vmem, size = 0x2000, scoped, tag = 'input window, operand 0, single buffered']
    #allocation3 [shape = 's32[1]{0}', space=sflag, size = 0x4, scoped, tag = 'scoped memory for tpu_custom_call.1']
    #allocation4 [shape = 's32[1]{0}', space=sflag, size = 0x4, scoped, tag = 'scoped memory for tpu_custom_call.1']
    #allocation5 [shape = 'u8[8192]{0}', space=vmem, size = 0x2000, scoped, tag = 'input window, operand 2, single buffered']
    #allocation6 [shape = 's32[1]{0}', space=sflag, size = 0x4, scoped, tag = 'scoped memory for tpu_custom_call.1']
    #allocation7 [shape = 'u8[8192]{0}', space=vmem, size = 0x2000, scoped, tag = 'output window, operand 0, single buffered']
    %17 = vsyncpa [#allocation3], 0
    %18 = vsyncpa [#allocation6], 0
    %19 = vsyncpa [#allocation4], 0
    // Predicated region
    $region2: #{tpu_custom_call.1} parent=1 // pred_check
      _
    $region3: #{tpu_custom_call.1} parent=1 // pred_check_branch
      %21 = sbr.rel (0) target = $region5
    $region4: #{tpu_custom_call.1} parent=1 // pred_region
      %s23 = ssub.s32 256, 256
      %24 = vsyncadd [#allocation3], %s23
      %s25 = sshll.u32 [#allocation2], 4
      %s26 = int_to_ptr.vmem [resolvable:$true] %s25
      %31 = dma.hbm_to_vmem [thread:$0]  %s0, 256, %s26, [#allocation3], 128, 128, 8
    $region5: #{tpu_custom_call.1} parent=1 // pred_fallthru
      _
    // Predicated region
    $region6: #{tpu_custom_call.1} parent=1 // pred_check
      _
    $region7: #{tpu_custom_call.1} parent=1 // pred_check_branch
      %33 = sbr.rel (0) target = $region9
    $region8: #{tpu_custom_call.1} parent=1 // pred_region
      _
    $region9: #{tpu_custom_call.1} parent=1 // pred_fallthru
      _
    // Predicated region
    $region10: #{tpu_custom_call.1} parent=1 // pred_check
      _
    $region11: #{tpu_custom_call.1} parent=1 // pred_check_branch
      %35 = sbr.rel (0) target = $region13
    $region12: #{tpu_custom_call.1} parent=1 // pred_region
      %s37 = ssub.s32 256, 256
      %38 = vsyncadd [#allocation6], %s37
      %s39 = sshll.u32 [#allocation5], 4
      %s40 = int_to_ptr.vmem [resolvable:$true] %s39
      %45 = dma.hbm_to_vmem [thread:$0]  %s2, 256, %s40, [#allocation6], 64, 64, 4
    $region13: #{tpu_custom_call.1} parent=1 // pred_fallthru
      _
    // Predicated region
    $region14: #{tpu_custom_call.1} parent=1 // pred_check
      _
    $region15: #{tpu_custom_call.1} parent=1 // pred_check_branch
      %47 = sbr.rel (0) target = $region17
    $region16: #{tpu_custom_call.1} parent=1 // pred_region
      _
    $region17: #{tpu_custom_call.1} parent=1 // pred_fallthru
      _
    // Predicated region
    $region18: #{tpu_custom_call.1} parent=1 // pred_check
      _
    $region19: #{tpu_custom_call.1} parent=1 // pred_check_branch
      %49 = sbr.rel (0) target = $region21
    $region20: #{tpu_custom_call.1} parent=1 // pred_region
      _
    $region21: #{tpu_custom_call.1} parent=1 // pred_fallthru
      _
    // Predicated region
    $region22: #{tpu_custom_call.1} parent=1 // pred_check
      _
    $region23: #{tpu_custom_call.1} parent=1 // pred_check_branch
      %51 = sbr.rel (0) target = $region25
    $region24: #{tpu_custom_call.1} parent=1 // pred_region
      _
    $region25: #{tpu_custom_call.1} parent=1 // pred_fallthru
      _
    // Predicated region
    $region26: #{tpu_custom_call.1} parent=1 // pred_check
      _
    $region27: #{tpu_custom_call.1} parent=1 // pred_check_branch
      %53 = sbr.rel (0) target = $region29
    $region28: #{tpu_custom_call.1} parent=1 // pred_region
      _
    $region29: #{tpu_custom_call.1} parent=1 // pred_fallthru
      _
    // Predicated region
    $region30: #{tpu_custom_call.1} parent=1 // pred_check
      _
    $region31: #{tpu_custom_call.1} parent=1 // pred_check_branch
      %55 = sbr.rel (0) target = $region33
    $region32: #{tpu_custom_call.1} parent=1 // pred_region
      _
    $region33: #{tpu_custom_call.1} parent=1 // pred_fallthru
      _
    // Predicated region
    $region34: #{tpu_custom_call.1} parent=1 // pred_check
      _
    $region35: #{tpu_custom_call.1} parent=1 // pred_check_branch
      %57 = sbr.rel (0) target = $region37
    $region36: #{tpu_custom_call.1} parent=1 // pred_region
      _
    $region37: #{tpu_custom_call.1} parent=1 // pred_fallthru
      _
    // Predicated region
    $region38: #{tpu_custom_call.1} parent=1 // pred_check
      _
    $region39: #{tpu_custom_call.1} parent=1 // pred_check_branch
      %59 = sbr.rel (0) target = $region41
    $region40: #{tpu_custom_call.1} parent=1 // pred_region
      _
    $region41: #{tpu_custom_call.1} parent=1 // pred_fallthru
      _
    // Predicated region
    $region42: #{tpu_custom_call.1} parent=1 // pred_check
      _
    $region43: #{tpu_custom_call.1} parent=1 // pred_check_branch
      %61 = sbr.rel (0) target = $region45
    $region44: #{tpu_custom_call.1} parent=1 // pred_region
      _
    $region45: #{tpu_custom_call.1} parent=1 // pred_fallthru
      _
    // Predicated region
    $region46: #{tpu_custom_call.1} parent=1 // pred_check
      _
    $region47: #{tpu_custom_call.1} parent=1 // pred_check_branch
      %63 = sbr.rel (0) target = $region49
    $region48: #{tpu_custom_call.1} parent=1 // pred_region
      _
    $region49: #{tpu_custom_call.1} parent=1 // pred_fallthru
      _
    // Predicated region
    $region50: #{tpu_custom_call.1} parent=1 // pred_check
      _
    $region51: #{tpu_custom_call.1} parent=1 // pred_check_branch
      %65 = sbr.rel (0) target = $region53
    $region52: #{tpu_custom_call.1} parent=1 // pred_region
      %66 = dma.done [#allocation3], 256
    $region53: #{tpu_custom_call.1} parent=1 // pred_fallthru
      _
    // Predicated region
    $region54: #{tpu_custom_call.1} parent=1 // pred_check
      _
    $region55: #{tpu_custom_call.1} parent=1 // pred_check_branch
      %68 = sbr.rel (0) target = $region57
    $region56: #{tpu_custom_call.1} parent=1 // pred_region
      %69 = dma.done [#allocation6], 256
    $region57: #{tpu_custom_call.1} parent=1 // pred_fallthru
      _
    %v71 = vld [vmem:[#allocation2] sm:$0xff]
    %v72 = vld [vmem:[#allocation2 + $0x8] sm:$0xff]
    %v73 = vpack.c.bf16 %v72, %v71
    %v74 = vld [vmem:[#allocation5] sm:$0xf]
    %v75 = vld [vmem:[#allocation5 + $0x4] sm:$0xf]
    %v76 = vld [vmem:[#allocation5 + $0x8] sm:$0xf]
    %v77 = vld [vmem:[#allocation5 + $0xc] sm:$0xf]
    %v78 = vld [vmem:[%s3] sm:$0x1]
    %v80 = vlaneseq
    %v81 = vshrl.u32 %v80, 7
    %v82 = vsub.s32 0, %v81
    %v83 = vrot.slane %v78, %v82
    %v89 = vunpack.c.l.b16 %v74
    %v90 = vunpack.c.l.b16 %v75
    %v91 = vunpack.c.l.b16 %v76
    %v92 = vunpack.c.l.b16 %v77
    %v93 = vpack.c.b16 %v90, %v89
    %v94 = vpack.c.b16 %v92, %v91
    %vm97 = vcmask 261120
    %v99 = vsel %vm97, %v73, 0
    %101 = vmatprep.subr.bf16.mxu0 0
    %102 = vmatpush1.bf16.msra.mxu0 0
    %103 = vmatprep.subr.bf16.mxu0 0
    %104 = vmatpush1.bf16.msra.mxu0 0
    %105 = vmatprep.subr.bf16.mxu0 0
    %106 = vmatpush1.bf16.msra.mxu0 0
    %107 = vmatprep.subr.bf16.mxu0 0
    %108 = vmatpush1.bf16.msra.mxu0 0
    %109 = vmatprep.subr.bf16.mxu0 0
    %110 = vmatpush1.bf16.msra.mxu0 0
    %111 = vmatprep.subr.bf16.mxu0 0
    %112 = vmatpush1.bf16.msra.mxu0 0
    %113 = vmatprep.subr.bf16.mxu0 0
    %114 = vmatpush1.bf16.msra.mxu0 %v94
    %115 = vmatprep.subr.bf16.mxu0 0
    %116 = vmatpush1.bf16.msra.mxu0 %v93
    %117 = vmatprep.subr.bf16.mxu0 0
    %118 = vmatpush2.bf16.msra.mxu0 0
    %119 = vmatprep.subr.bf16.mxu0 0
    %120 = vmatpush2.bf16.msra.mxu0 0
    %121 = vmatprep.subr.bf16.mxu0 0
    %122 = vmatpush2.bf16.msra.mxu0 0
    %123 = vmatprep.subr.bf16.mxu0 0
    %124 = vmatpush2.bf16.msra.mxu0 0
    %125 = vmatprep.subr.bf16.mxu0 0
    %126 = vmatpush2.bf16.msra.mxu0 0
    %127 = vmatprep.subr.bf16.mxu0 0
    %128 = vmatpush2.bf16.msra.mxu0 0
    %129 = vmatprep.subr.bf16.mxu0 0
    %130 = vmatpush2.bf16.msra.mxu0 0
    %131 = vmatprep.subr.bf16.mxu0 0
    %132 = vmatpush2.bf16.msra.mxu0 0
    %133 = vmatprep.mubr.bf16.mxu0 0
    %134 = vmatmul.mubr.bf16.gmra.mxu0 %v99
    %v135 = vpop.f32.mrf.mxu0
    %v136 = vadd.f32 %v83, %v135
    %v137 = vpop.f32.mrf.mxu0
    %v138 = vpop.f32.mrf.mxu0
    %v139 = vadd.f32 %v83, %v138
    %v140 = vpop.f32.mrf.mxu0
    %141 = vdwg.mxu0
    %v142 = vmax.f32 %v136, 0.0
    %v143 = vmax.f32 %v139, 0.0
    %v144 = vpack.c.bf16 %v143, %v142
    %v145 = vld [vmem:[%s4] sm:$0xf]
    %v146 = vld [vmem:[%s4 + $0x4] sm:$0xf]
    %v147 = vld [vmem:[%s4 + $0x8] sm:$0xf]
    %v148 = vld [vmem:[%s4 + $0xc] sm:$0xf]
    %v149 = vld [vmem:[%s4 + $0x10] sm:$0xf]
    %v150 = vld [vmem:[%s4 + $0x14] sm:$0xf]
    %v151 = vld [vmem:[%s4 + $0x18] sm:$0xf]
    %v152 = vld [vmem:[%s4 + $0x1c] sm:$0xf]
    %v153 = vld [vmem:[%s4 + $0x20] sm:$0xf]
    %v154 = vld [vmem:[%s4 + $0x24] sm:$0xf]
    %v155 = vld [vmem:[%s4 + $0x28] sm:$0xf]
    %v156 = vld [vmem:[%s4 + $0x2c] sm:$0xf]
    %v157 = vld [vmem:[%s4 + $0x30] sm:$0xf]
    %v158 = vld [vmem:[%s4 + $0x34] sm:$0xf]
    %v159 = vld [vmem:[%s4 + $0x38] sm:$0xf]
    %v160 = vld [vmem:[%s4 + $0x3c] sm:$0xf]
    %v161 = vld [vmem:[%s5] sm:$0x1]
    %v163 = vlaneseq
    %v164 = vshrl.u32 %v163, 7
    %v165 = vsub.s32 0, %v164
    %v166 = vrot.slane %v161, %v165
    %v184 = vunpack.c.l.b16 %v145
    %v185 = vunpack.c.l.b16 %v146
    %v186 = vunpack.c.l.b16 %v147
    %v187 = vunpack.c.l.b16 %v148
    %v188 = vunpack.c.l.b16 %v149
    %v189 = vunpack.c.l.b16 %v150
    %v190 = vunpack.c.l.b16 %v151
    %v191 = vunpack.c.l.b16 %v152
    %v192 = vunpack.c.l.b16 %v153
    %v193 = vunpack.c.l.b16 %v154
    %v194 = vunpack.c.l.b16 %v155
    %v195 = vunpack.c.l.b16 %v156
    %v196 = vunpack.c.l.b16 %v157
    %v197 = vunpack.c.l.b16 %v158
    %v198 = vunpack.c.l.b16 %v159
    %v199 = vunpack.c.l.b16 %v160
    %v200 = vpack.c.b16 %v185, %v184
    %v201 = vpack.c.b16 %v187, %v186
    %v202 = vpack.c.b16 %v189, %v188
    %v203 = vpack.c.b16 %v191, %v190
    %v204 = vpack.c.b16 %v193, %v192
    %v205 = vpack.c.b16 %v195, %v194
    %v206 = vpack.c.b16 %v197, %v196
    %v207 = vpack.c.b16 %v199, %v198
    %216 = vmatprep.subr.bf16.mxu0 0
    %217 = vmatpush1.bf16.msra.mxu0 %v207
    %218 = vmatprep.subr.bf16.mxu0 0
    %219 = vmatpush1.bf16.msra.mxu0 %v206
    %220 = vmatprep.subr.bf16.mxu0 0
    %221 = vmatpush1.bf16.msra.mxu0 %v205
    %222 = vmatprep.subr.bf16.mxu0 0
    %223 = vmatpush1.bf16.msra.mxu0 %v204
    %224 = vmatprep.subr.bf16.mxu0 0
    %225 = vmatpush1.bf16.msra.mxu0 %v203
    %226 = vmatprep.subr.bf16.mxu0 0
    %227 = vmatpush1.bf16.msra.mxu0 %v202
    %228 = vmatprep.subr.bf16.mxu0 0
    %229 = vmatpush1.bf16.msra.mxu0 %v201
    %230 = vmatprep.subr.bf16.mxu0 0
    %231 = vmatpush1.bf16.msra.mxu0 %v200
    %232 = vmatprep.subr.bf16.mxu0 0
    %233 = vmatpush2.bf16.msra.mxu0 0
    %234 = vmatprep.subr.bf16.mxu0 0
    %235 = vmatpush2.bf16.msra.mxu0 0
    %236 = vmatprep.subr.bf16.mxu0 0
    %237 = vmatpush2.bf16.msra.mxu0 0
    %238 = vmatprep.subr.bf16.mxu0 0
    %239 = vmatpush2.bf16.msra.mxu0 0
    %240 = vmatprep.subr.bf16.mxu0 0
    %241 = vmatpush2.bf16.msra.mxu0 0
    %242 = vmatprep.subr.bf16.mxu0 0
    %243 = vmatpush2.bf16.msra.mxu0 0
    %244 = vmatprep.subr.bf16.mxu0 0
    %245 = vmatpush2.bf16.msra.mxu0 0
    %246 = vmatprep.subr.bf16.mxu0 0
    %247 = vmatpush2.bf16.msra.mxu0 0
    %248 = vmatprep.mubr.bf16.mxu0 0
    %249 = vmatmul.mubr.bf16.gmra.mxu0 %v144
    %v250 = vpop.f32.mrf.mxu0
    %v251 = vadd.f32 %v166, %v250
    %v252 = vpop.f32.mrf.mxu0
    %v253 = vpop.f32.mrf.mxu0
    %v254 = vadd.f32 %v166, %v253
    %v255 = vpop.f32.mrf.mxu0
    %256 = vdwg.mxu0
    %v257 = vmax.f32 %v251, 0.0
    %v258 = vmax.f32 %v254, 0.0
    %v259 = vpack.c.bf16 %v258, %v257
    %v260 = vld [vmem:[%s6] sm:$0xff]
    %v261 = vld [vmem:[%s6 + $0x8] sm:$0xff]
    %v262 = vld [vmem:[%s6 + $0x10] sm:$0xff]
    %v263 = vld [vmem:[%s6 + $0x18] sm:$0xff]
    %v264 = vld [vmem:[%s6 + $0x20] sm:$0xff]
    %v265 = vld [vmem:[%s6 + $0x28] sm:$0xff]
    %v266 = vld [vmem:[%s6 + $0x30] sm:$0xff]
    %v267 = vld [vmem:[%s6 + $0x38] sm:$0xff]
    %v268 = vld [vmem:[%s7] sm:$0x3]
    %v270 = vlaneseq
    %v271 = vshrl.u32 %v270, 7
    %v272 = vsub.s32 0, %v271
    %v273 = vrot.slane %v268, %v272
    %v274 = vlaneseq
    %v275 = vshrl.u32 %v274, 7
    %v276 = vsub.s32 1, %v275
    %v277 = vrot.slane %v268, %v276
    %v288 = vunpack.c.l.b16 %v260
    %v289 = vunpack.c.h.b16 %v260
    %v290 = vunpack.c.l.b16 %v261
    %v291 = vunpack.c.h.b16 %v261
    %v292 = vunpack.c.l.b16 %v262
    %v293 = vunpack.c.h.b16 %v262
    %v294 = vunpack.c.l.b16 %v263
    %v295 = vunpack.c.h.b16 %v263
    %v296 = vunpack.c.l.b16 %v264
    %v297 = vunpack.c.h.b16 %v264
    %v298 = vunpack.c.l.b16 %v265
    %v299 = vunpack.c.h.b16 %v265
    %v300 = vunpack.c.l.b16 %v266
    %v301 = vunpack.c.h.b16 %v266
    %v302 = vunpack.c.l.b16 %v267
    %v303 = vunpack.c.h.b16 %v267
    %v304 = vpack.c.b16 %v290, %v288
    %v305 = vpack.c.b16 %v291, %v289
    %v306 = vpack.c.b16 %v294, %v292
    %v307 = vpack.c.b16 %v295, %v293
    %v308 = vpack.c.b16 %v298, %v296
    %v309 = vpack.c.b16 %v299, %v297
    %v310 = vpack.c.b16 %v302, %v300
    %v311 = vpack.c.b16 %v303, %v301
    %vm320 = vcmask 523264
    %v322 = vsel %vm320, %v259, 0
    %324 = vmatprep.subr.bf16.mxu0 0
    %325 = vmatpush1.bf16.msra.mxu0 0
    %326 = vmatprep.subr.bf16.mxu0 0
    %327 = vmatpush1.bf16.msra.mxu0 0
    %328 = vmatprep.subr.bf16.mxu0 0
    %329 = vmatpush1.bf16.msra.mxu0 0
    %330 = vmatprep.subr.bf16.mxu0 0
    %331 = vmatpush1.bf16.msra.mxu0 0
    %332 = vmatprep.subr.bf16.mxu0 %v311
    %333 = vmatpush1.bf16.msra.mxu0 %v310
    %334 = vmatprep.subr.bf16.mxu0 %v309
    %335 = vmatpush1.bf16.msra.mxu0 %v308
    %336 = vmatprep.subr.bf16.mxu0 %v307
    %337 = vmatpush1.bf16.msra.mxu0 %v306
    %338 = vmatprep.subr.bf16.mxu0 %v305
    %339 = vmatpush1.bf16.msra.mxu0 %v304
    %340 = vmatprep.subr.bf16.mxu0 0
    %341 = vmatpush2.bf16.msra.mxu0 0
    %342 = vmatprep.subr.bf16.mxu0 0
    %343 = vmatpush2.bf16.msra.mxu0 0
    %344 = vmatprep.subr.bf16.mxu0 0
    %345 = vmatpush2.bf16.msra.mxu0 0
    %346 = vmatprep.subr.bf16.mxu0 0
    %347 = vmatpush2.bf16.msra.mxu0 0
    %348 = vmatprep.subr.bf16.mxu0 0
    %349 = vmatpush2.bf16.msra.mxu0 0
    %350 = vmatprep.subr.bf16.mxu0 0
    %351 = vmatpush2.bf16.msra.mxu0 0
    %352 = vmatprep.subr.bf16.mxu0 0
    %353 = vmatpush2.bf16.msra.mxu0 0
    %354 = vmatprep.subr.bf16.mxu0 0
    %355 = vmatpush2.bf16.msra.mxu0 0
    %356 = vmatprep.mubr.bf16.mxu0 0
    %357 = vmatmul.mubr.bf16.gmra.mxu0 %v322
    %v358 = vpop.f32.mrf.mxu0
    %v359 = vadd.f32 %v273, %v358
    %v360 = vpop.f32.mrf.mxu0
    %v361 = vadd.f32 %v277, %v360
    %v362 = vpop.f32.mrf.mxu0
    %v363 = vadd.f32 %v273, %v362
    %v364 = vpop.f32.mrf.mxu0
    %v365 = vadd.f32 %v277, %v364
    %366 = vdwg.mxu0
    %v367 = vmax.f32 %v359, 0.0
    %v368 = vmax.f32 %v361, 0.0
    %v369 = vmax.f32 %v363, 0.0
    %v370 = vmax.f32 %v365, 0.0
    %v371 = vpack.c.bf16 %v369, %v367
    %v372 = vpack.c.bf16 %v370, %v368
    %v373 = vld [vmem:[%s8] sm:$0xf]
    %v374 = vld [vmem:[%s8 + $0x4] sm:$0xf]
    %v375 = vld [vmem:[%s8 + $0x8] sm:$0xf]
    %v376 = vld [vmem:[%s8 + $0xc] sm:$0xf]
    %v377 = vld [vmem:[%s8 + $0x10] sm:$0xf]
    %v378 = vld [vmem:[%s8 + $0x14] sm:$0xf]
    %v379 = vld [vmem:[%s8 + $0x18] sm:$0xf]
    %v380 = vld [vmem:[%s8 + $0x1c] sm:$0xf]
    %v381 = vld [vmem:[%s8 + $0x20] sm:$0xf]
    %v382 = vld [vmem:[%s8 + $0x24] sm:$0xf]
    %v383 = vld [vmem:[%s8 + $0x28] sm:$0xf]
    %v384 = vld [vmem:[%s8 + $0x2c] sm:$0xf]
    %v385 = vld [vmem:[%s8 + $0x30] sm:$0xf]
    %v386 = vld [vmem:[%s8 + $0x34] sm:$0xf]
    %v387 = vld [vmem:[%s8 + $0x38] sm:$0xf]
    %v388 = vld [vmem:[%s8 + $0x3c] sm:$0xf]
    %v389 = vld [vmem:[%s8 + $0x40] sm:$0xf]
    %v390 = vld [vmem:[%s8 + $0x44] sm:$0xf]
    %v391 = vld [vmem:[%s8 + $0x48] sm:$0xf]
    %v392 = vld [vmem:[%s8 + $0x4c] sm:$0xf]
    %v393 = vld [vmem:[%s8 + $0x50] sm:$0xf]
    %v394 = vld [vmem:[%s8 + $0x54] sm:$0xf]
    %v395 = vld [vmem:[%s8 + $0x58] sm:$0xf]
    %v396 = vld [vmem:[%s8 + $0x5c] sm:$0xf]
    %v397 = vld [vmem:[%s8 + $0x60] sm:$0xf]
    %v398 = vld [vmem:[%s8 + $0x64] sm:$0xf]
    %v399 = vld [vmem:[%s8 + $0x68] sm:$0xf]
    %v400 = vld [vmem:[%s8 + $0x6c] sm:$0xf]
    %v401 = vld [vmem:[%s8 + $0x70] sm:$0xf]
    %v402 = vld [vmem:[%s8 + $0x74] sm:$0xf]
    %v403 = vld [vmem:[%s8 + $0x78] sm:$0xf]
    %v404 = vld [vmem:[%s8 + $0x7c] sm:$0xf]
    %v405 = vld [vmem:[%s9] sm:$0x1]
    %v407 = vlaneseq
    %v408 = vshrl.u32 %v407, 7
    %v409 = vsub.s32 0, %v408
    %v410 = vrot.slane %v405, %v409
    %v444 = vunpack.c.l.b16 %v373
    %v445 = vunpack.c.l.b16 %v374
    %v446 = vunpack.c.l.b16 %v375
    %v447 = vunpack.c.l.b16 %v376
    %v448 = vunpack.c.l.b16 %v377
    %v449 = vunpack.c.l.b16 %v378
    %v450 = vunpack.c.l.b16 %v379
    %v451 = vunpack.c.l.b16 %v380
    %v452 = vunpack.c.l.b16 %v381
    %v453 = vunpack.c.l.b16 %v382
    %v454 = vunpack.c.l.b16 %v383
    %v455 = vunpack.c.l.b16 %v384
    %v456 = vunpack.c.l.b16 %v385
    %v457 = vunpack.c.l.b16 %v386
    %v458 = vunpack.c.l.b16 %v387
    %v459 = vunpack.c.l.b16 %v388
    %v460 = vunpack.c.l.b16 %v389
    %v461 = vunpack.c.l.b16 %v390
    %v462 = vunpack.c.l.b16 %v391
    %v463 = vunpack.c.l.b16 %v392
    %v464 = vunpack.c.l.b16 %v393
    %v465 = vunpack.c.l.b16 %v394
    %v466 = vunpack.c.l.b16 %v395
    %v467 = vunpack.c.l.b16 %v396
    %v468 = vunpack.c.l.b16 %v397
    %v469 = vunpack.c.l.b16 %v398
    %v470 = vunpack.c.l.b16 %v399
    %v471 = vunpack.c.l.b16 %v400
    %v472 = vunpack.c.l.b16 %v401
    %v473 = vunpack.c.l.b16 %v402
    %v474 = vunpack.c.l.b16 %v403
    %v475 = vunpack.c.l.b16 %v404
    %v476 = vpack.c.b16 %v445, %v444
    %v477 = vpack.c.b16 %v447, %v446
    %v478 = vpack.c.b16 %v449, %v448
    %v479 = vpack.c.b16 %v451, %v450
    %v480 = vpack.c.b16 %v453, %v452
    %v481 = vpack.c.b16 %v455, %v454
    %v482 = vpack.c.b16 %v457, %v456
    %v483 = vpack.c.b16 %v459, %v458
    %v484 = vpack.c.b16 %v461, %v460
    %v485 = vpack.c.b16 %v463, %v462
    %v486 = vpack.c.b16 %v465, %v464
    %v487 = vpack.c.b16 %v467, %v466
    %v488 = vpack.c.b16 %v469, %v468
    %v489 = vpack.c.b16 %v471, %v470
    %v490 = vpack.c.b16 %v473, %v472
    %v491 = vpack.c.b16 %v475, %v474
    %508 = vmatprep.subr.bf16.mxu0 0
    %509 = vmatpush1.bf16.msra.mxu0 %v483
    %510 = vmatprep.subr.bf16.mxu0 0
    %511 = vmatpush1.bf16.msra.mxu0 %v482
    %512 = vmatprep.subr.bf16.mxu0 0
    %513 = vmatpush1.bf16.msra.mxu0 %v481
    %514 = vmatprep.subr.bf16.mxu0 0
    %515 = vmatpush1.bf16.msra.mxu0 %v480
    %516 = vmatprep.subr.bf16.mxu0 0
    %517 = vmatpush1.bf16.msra.mxu0 %v479
    %518 = vmatprep.subr.bf16.mxu0 0
    %519 = vmatpush1.bf16.msra.mxu0 %v478
    %520 = vmatprep.subr.bf16.mxu0 0
    %521 = vmatpush1.bf16.msra.mxu0 %v477
    %522 = vmatprep.subr.bf16.mxu0 0
    %523 = vmatpush1.bf16.msra.mxu0 %v476
    %524 = vmatprep.subr.bf16.mxu0 0
    %525 = vmatpush2.bf16.msra.mxu0 %v491
    %526 = vmatprep.subr.bf16.mxu0 0
    %527 = vmatpush2.bf16.msra.mxu0 %v490
    %528 = vmatprep.subr.bf16.mxu0 0
    %529 = vmatpush2.bf16.msra.mxu0 %v489
    %530 = vmatprep.subr.bf16.mxu0 0
    %531 = vmatpush2.bf16.msra.mxu0 %v488
    %532 = vmatprep.subr.bf16.mxu0 0
    %533 = vmatpush2.bf16.msra.mxu0 %v487
    %534 = vmatprep.subr.bf16.mxu0 0
    %535 = vmatpush2.bf16.msra.mxu0 %v486
    %536 = vmatprep.subr.bf16.mxu0 0
    %537 = vmatpush2.bf16.msra.mxu0 %v485
    %538 = vmatprep.subr.bf16.mxu0 0
    %539 = vmatpush2.bf16.msra.mxu0 %v484
    %540 = vmatprep.mubr.bf16.mxu0 %v372
    %541 = vmatmul.mubr.bf16.gmra.mxu0 %v371
    %v542 = vpop.f32.mrf.mxu0
    %v543 = vadd.f32 %v410, %v542
    %v544 = vpop.f32.mrf.mxu0
    %v545 = vpop.f32.mrf.mxu0
    %v546 = vadd.f32 %v410, %v545
    %v547 = vpop.f32.mrf.mxu0
    %548 = vdwg.mxu0
    %v549 = vmax.f32 %v543, 0.0
    %v550 = vmax.f32 %v546, 0.0
    %v551 = vpack.c.bf16 %v550, %v549
    %v552 = vld [vmem:[%s10] sm:$0xf]
    %v553 = vld [vmem:[%s10 + $0x4] sm:$0xf]
    %v554 = vld [vmem:[%s10 + $0x8] sm:$0xf]
    %v555 = vld [vmem:[%s10 + $0xc] sm:$0xf]
    %v556 = vld [vmem:[%s10 + $0x10] sm:$0xf]
    %v557 = vld [vmem:[%s10 + $0x14] sm:$0xf]
    %v558 = vld [vmem:[%s10 + $0x18] sm:$0xf]
    %v559 = vld [vmem:[%s10 + $0x1c] sm:$0xf]
    %v560 = vld [vmem:[%s10 + $0x20] sm:$0xf]
    %v561 = vld [vmem:[%s10 + $0x24] sm:$0xf]
    %v562 = vld [vmem:[%s10 + $0x28] sm:$0xf]
    %v563 = vld [vmem:[%s10 + $0x2c] sm:$0xf]
    %v564 = vld [vmem:[%s10 + $0x30] sm:$0xf]
    %v565 = vld [vmem:[%s10 + $0x34] sm:$0xf]
    %v566 = vld [vmem:[%s10 + $0x38] sm:$0xf]
    %v567 = vld [vmem:[%s10 + $0x3c] sm:$0xf]
    %v568 = vld [vmem:[%s11] sm:$0x1]
    %v570 = vlaneseq
    %v571 = vshrl.u32 %v570, 7
    %v572 = vsub.s32 0, %v571
    %v573 = vrot.slane %v568, %v572
    %v591 = vunpack.c.l.b16 %v552
    %v592 = vunpack.c.l.b16 %v553
    %v593 = vunpack.c.l.b16 %v554
    %v594 = vunpack.c.l.b16 %v555
    %v595 = vunpack.c.l.b16 %v556
    %v596 = vunpack.c.l.b16 %v557
    %v597 = vunpack.c.l.b16 %v558
    %v598 = vunpack.c.l.b16 %v559
    %v599 = vunpack.c.l.b16 %v560
    %v600 = vunpack.c.l.b16 %v561
    %v601 = vunpack.c.l.b16 %v562
    %v602 = vunpack.c.l.b16 %v563
    %v603 = vunpack.c.l.b16 %v564
    %v604 = vunpack.c.l.b16 %v565
    %v605 = vunpack.c.l.b16 %v566
    %v606 = vunpack.c.l.b16 %v567
    %v607 = vpack.c.b16 %v592, %v591
    %v608 = vpack.c.b16 %v594, %v593
    %v609 = vpack.c.b16 %v596, %v595
    %v610 = vpack.c.b16 %v598, %v597
    %v611 = vpack.c.b16 %v600, %v599
    %v612 = vpack.c.b16 %v602, %v601
    %v613 = vpack.c.b16 %v604, %v603
    %v614 = vpack.c.b16 %v606, %v605
    %623 = vmatprep.subr.bf16.mxu0 0
    %624 = vmatpush1.bf16.msra.mxu0 %v614
    %625 = vmatprep.subr.bf16.mxu0 0
    %626 = vmatpush1.bf16.msra.mxu0 %v613
    %627 = vmatprep.subr.bf16.mxu0 0
    %628 = vmatpush1.bf16.msra.mxu0 %v612
    %629 = vmatprep.subr.bf16.mxu0 0
    %630 = vmatpush1.bf16.msra.mxu0 %v611
    %631 = vmatprep.subr.bf16.mxu0 0
    %632 = vmatpush1.bf16.msra.mxu0 %v610
    %633 = vmatprep.subr.bf16.mxu0 0
    %634 = vmatpush1.bf16.msra.mxu0 %v609
    %635 = vmatprep.subr.bf16.mxu0 0
    %636 = vmatpush1.bf16.msra.mxu0 %v608
    %637 = vmatprep.subr.bf16.mxu0 0
    %638 = vmatpush1.bf16.msra.mxu0 %v607
    %639 = vmatprep.subr.bf16.mxu0 0
    %640 = vmatpush2.bf16.msra.mxu0 0
    %641 = vmatprep.subr.bf16.mxu0 0
    %642 = vmatpush2.bf16.msra.mxu0 0
    %643 = vmatprep.subr.bf16.mxu0 0
    %644 = vmatpush2.bf16.msra.mxu0 0
    %645 = vmatprep.subr.bf16.mxu0 0
    %646 = vmatpush2.bf16.msra.mxu0 0
    %647 = vmatprep.subr.bf16.mxu0 0
    %648 = vmatpush2.bf16.msra.mxu0 0
    %649 = vmatprep.subr.bf16.mxu0 0
    %650 = vmatpush2.bf16.msra.mxu0 0
    %651 = vmatprep.subr.bf16.mxu0 0
    %652 = vmatpush2.bf16.msra.mxu0 0
    %653 = vmatprep.subr.bf16.mxu0 0
    %654 = vmatpush2.bf16.msra.mxu0 0
    %655 = vmatprep.mubr.bf16.mxu0 0
    %656 = vmatmul.mubr.bf16.gmra.mxu0 %v551
    %v657 = vpop.f32.mrf.mxu0
    %v658 = vadd.f32 %v573, %v657
    %v659 = vpop.f32.mrf.mxu0
    %v660 = vpop.f32.mrf.mxu0
    %v661 = vadd.f32 %v573, %v660
    %v662 = vpop.f32.mrf.mxu0
    %663 = vdwg.mxu0
    %v664 = vld [vmem:[%s1] sm:$0xff]
    %v665 = vld [vmem:[%s1 + $0x8] sm:$0xff]
    %v666 = vadd.f32 %v664, 1e-10
    %v667 = vadd.f32 %v665, 1e-10
    %v668 = vlog2.pop %v666
    %v669 = vmul.f32 %v668, 0.6931472
    %v670 = vlog2.pop %v667
    %v671 = vmul.f32 %v670, 0.6931472
    %v672 = vsub.f32 1e-10, %v669
    %v673 = vsub.f32 1e-10, %v671
    %v674 = vlog2.pop %v672
    %v675 = vmul.f32 %v674, 0.6931472
    %v676 = vlog2.pop %v673
    %v677 = vmul.f32 %v676, 0.6931472
    %v678 = vsub.f32 0.0, %v675
    %v679 = vsub.f32 0.0, %v677
    %v680 = vadd.f32 %v658, %v678
    %v681 = vadd.f32 %v661, %v679
    %v682 = vmul.f32 %v680, 2.0
    %v683 = vmul.f32 %v681, 2.0
    %vm684 = vcmask 39936
    %v685 = vsel %vm684, %v682, -inf
    %686 = vmax.xlane.f32.xlu0 %v685
    %v687 = vpop.xlane.xlu0 %686
    %v688 = vsel %vm684, %v683, -inf
    %689 = vmax.xlane.f32.xlu0 %v688
    %v690 = vpop.xlane.xlu0 %689
    %v691 = vsub.f32 %v682, %v687
    %v692 = vsub.f32 %v683, %v690
    %v693 = vmul.f32 %v691, 1.442695
    %v694 = vpow.pop %v693
    %v695 = vmul.f32 %v692, 1.442695
    %v696 = vpow.pop %v695
    %v697 = vsel %vm684, %v694, 0.0
    %698 = vadd.xlane.f32.xlu0 %v697
    %v699 = vpop.xlane.xlu0 %698
    %v700 = vsel %vm684, %v696, 0.0
    %701 = vadd.xlane.f32.xlu0 %v700
    %v702 = vpop.xlane.xlu0 %701
    %v703 = vrcp.pop %v699
    %v704 = vmul.f32 %v694, %v703
    %v705 = vrcp.pop %v702
    %v706 = vmul.f32 %v696, %v705
    %vm707 = vcmp.ge.f32.partialorder %v658, 0.0
    %vm708 = vcmp.ge.f32.partialorder %v661, 0.0
    %v709 = vsub.f32 0.0, %v658
    %v710 = vsub.f32 0.0, %v661
    %v711 = vsel %vm707, %v709, %v658
    %v712 = vsel %vm708, %v710, %v661
    %v713 = vmul.f32 %v711, 1.442695
    %v714 = vpow.pop %v713
    %v715 = vmul.f32 %v712, 1.442695
    %v716 = vpow.pop %v715
    %v717 = vsel %vm707, 1.0, %v714
    %v718 = vsel %vm708, 1.0, %v716
    %v719 = vadd.f32 %v714, 1.0
    %v720 = vadd.f32 %v716, 1.0
    %v721 = vrcp.pop %v719
    %v722 = vmul.f32 %v717, %v721
    %v723 = vrcp.pop %v720
    %v724 = vmul.f32 %v718, %v723
    %726 = vset.pattern.permute.xlu0 5
    %727 = vperm.xlu0 %726, %v722
    %v728 = vpop.permute.xlu0 %727
    %731 = vset.pattern.permute.xlu0 5
    %732 = vperm.xlu0 %731, %v724
    %v733 = vpop.permute.xlu0 %732
    %v735 = vmul.f32 %v728, %v704
    %v736 = vmul.f32 %v733, %v706
    %739 = vrot.lane.b32.xlu0 %v704, 5
    %v740 = vpop.permute.xlu0 %739
    %741 = vrot.lane.b32.xlu0 %v706, 5
    %v742 = vpop.permute.xlu0 %741
    %v745 = vsel %vm684, %v735, %v740
    %v746 = vsel %vm684, %v736, %v742
    %vm747 = vcmask 80896
    %748 = vst.msk [vmem:[#allocation7] sm:$0xff] %vm747, %v745
    %749 = vst.msk [vmem:[#allocation7 + $0x8] sm:$0xff] %vm747, %v746
    // Predicated region
    $region58: #{tpu_custom_call.1} parent=1 // pred_check
      _
    $region59: #{tpu_custom_call.1} parent=1 // pred_check_branch
      %751 = sbr.rel (0) target = $region61
    $region60: #{tpu_custom_call.1} parent=1 // pred_region
      %s753 = ssub.s32 256, 256
      %754 = vsyncadd [#allocation4], %s753
      %s755 = sshll.u32 [#allocation7], 4
      %s756 = int_to_ptr.vmem [resolvable:$true] %s755
      %761 = dma.vmem_to_hbm [thread:$0]  %s756, 256, %s12, [#allocation4], 128, 128, 8
    $region61: #{tpu_custom_call.1} parent=1 // pred_fallthru
      _
    // Predicated region
    $region62: #{tpu_custom_call.1} parent=1 // pred_check
      _
    $region63: #{tpu_custom_call.1} parent=1 // pred_check_branch
      %763 = sbr.rel (0) target = $region65
    $region64: #{tpu_custom_call.1} parent=1 // pred_region
      %764 = dma.done [#allocation4], 256
    $region65: #{tpu_custom_call.1} parent=1 // pred_fallthru
      _
    %765 = vsyncpa [#allocation3], 1
    %766 = vsyncpa [#allocation6], 1
    %767 = vsyncpa [#allocation4], 1

</llo_original>
